<compile_context>
chip_gen: v5e
topology: v5e:2x2
jax: 0.10.0
libtpu: 0.0.40
codegen_flags: <defaults>
</compile_context>

<pallas_src>
import functools

import jax
import jax.numpy as jnp
from jax import lax
from jax.experimental import pallas as pl
from jax.experimental.pallas import tpu as pltpu


def _maxpool3x3_kernel(x_ref, o_ref, *, H, W):
    x = x_ref[...]                       # (Bp, H*W): Bp flattened planes
    HW = H * W
    neg = jnp.asarray(-jnp.inf, dtype=x.dtype)          # scalar fill
    idx = lax.broadcasted_iota(jnp.int32, (1, HW), 1)   # flat index per plane

    # --- vertical pass: neighbors at +/- W along the flattened (lane) axis ---
    # x[i+1, j] -> roll by -W (== HW - W); invalid on the last row (idx >= (H-1)*W)
    up = jnp.where(idx < (H - 1) * W, pltpu.roll(x, shift=HW - W, axis=1), neg)
    # x[i-1, j] -> roll by +W; invalid on the first row (idx < W)
    down = jnp.where(idx >= W, pltpu.roll(x, shift=W, axis=1), neg)
    v = jnp.maximum(jnp.maximum(x, up), down)

    # --- horizontal pass: neighbors at +/- 1; mask the plane-row boundaries ---
    col = idx % W
    right = jnp.where(col < W - 1, pltpu.roll(v, shift=HW - 1, axis=1), neg)
    left = jnp.where(col > 0, pltpu.roll(v, shift=1, axis=1), neg)
    o_ref[...] = jnp.maximum(jnp.maximum(v, left), right)


def maxpool3x3(x, *, block_bytes=1 << 20, vmem_limit_bytes=32 << 20):
    """3x3 max pool, stride 1, padding 1 (same spatial size). x: (N, C, H, W)."""
    assert jnp.issubdtype(x.dtype, jnp.floating), (
        "maxpool3x3 uses -inf padding and requires a floating dtype")
    N, C, H, W = x.shape
    NC, HW = N * C, H * W
    itemsize = jnp.dtype(x.dtype).itemsize

    # Free (row-major) reshape: planes become lane-dense rows of length H*W.
    x2 = x.reshape(NC, HW)

    # Pick Bp planes per block: ~block_bytes per block, multiple of 8 sublanes
    # (or the full NC extent, which is always a legal block dim).
    bp_target = max(1, block_bytes // (HW * itemsize))
    if bp_target >= NC:
        bp = NC
    else:
        bp = max(8, (bp_target // 8) * 8)
        bp = min(bp, NC)
    grid = (pl.cdiv(NC, bp),)

    cost = pl.CostEstimate(
        flops=8 * NC * HW,                 # ~4 max + 4 select per element
        transcendentals=0,
        bytes_accessed=2 * NC * HW * itemsize,
    )

    out2 = pl.pallas_call(
        functools.partial(_maxpool3x3_kernel, H=H, W=W),
        out_shape=jax.ShapeDtypeStruct((NC, HW), x.dtype),
        grid=grid,
        in_specs=[pl.BlockSpec((bp, HW), lambda i: (i, 0))],
        out_specs=pl.BlockSpec((bp, HW), lambda i: (i, 0)),
        compiler_params=pltpu.CompilerParams(
            dimension_semantics=("parallel",),
            vmem_limit_bytes=vmem_limit_bytes,
        ),
        cost_estimate=cost,
    )(x2)
    return out2.reshape(N, C, H, W)


def _ref_maxpool3x3(x):
    """Pure-JAX reference: pad with -inf, max over the 9 shifted views."""
    N, C, H, W = x.shape
    xp = jnp.pad(x, ((0, 0), (0, 0), (1, 1), (1, 1)),
                 constant_values=-jnp.inf)
    views = [xp[:, :, dy:dy + H, dx:dx + W]
             for dy in range(3) for dx in range(3)]
    return jnp.max(jnp.stack(views, axis=0), axis=0)


if __name__ == "__main__":
    key = jax.random.PRNGKey(0)
    x = jax.random.normal(key, (2, 4, 16, 16), dtype=jnp.float32)

    out = maxpool3x3(x)
    out = jax.block_until_ready(out)

    ref = _ref_maxpool3x3(x)
    assert out.shape == ref.shape == x.shape
    assert jnp.allclose(out, ref), "Pallas maxpool mismatch vs reference"
    print("KERNEL_OK")
</pallas_src>

<mosaic_0001>
module attributes {stable_mosaic.version = 11 : i64} {
  func.func @_maxpool3x3_kernel(%arg0: i32, %arg1: memref<8x256xf32, #tpu.memory_space<vmem>>, %arg2: memref<8x256xf32, #tpu.memory_space<vmem>>) attributes {dimension_semantics = [#tpu.dimension_semantics<parallel>], iteration_bounds = array<i64: 1>, scalar_prefetch = 0 : i64, scratch_operands = 0 : i64, tpu.core_type = #tpu.core_type<tc>, window_params = [{transform_indices = @transform_0, window_bounds = array<i64: 8, 256>}, {transform_indices = @transform_1, window_bounds = array<i64: 8, 256>}]} {
    %c0 = arith.constant 0 : index
    %c0_0 = arith.constant 0 : index
    %0 = vector.load %arg1[%c0, %c0_0] : memref<8x256xf32, #tpu.memory_space<vmem>>, vector<8x256xf32>
    %1 = tpu.iota {dimensions = array<i32: 1>} : vector<1x256xi32>
    %c240_i32 = arith.constant 240 : i32
    %2 = vector.broadcast %c240_i32 : i32 to vector<1x256xi32>
    %3 = arith.cmpi slt, %1, %2 : vector<1x256xi32>
    %c240_i32_1 = arith.constant 240 : i32
    %4 = tpu.dynamic_rotate %0 by %c240_i32_1 dim 1 : vector<8x256xf32>, i32 -> vector<8x256xf32>
    %cst = arith.constant 0xFF800000 : f32
    %5 = vector.shape_cast %3 : vector<1x256xi1> to vector<1x256xi1>
    %6 = vector.broadcast %5 : vector<1x256xi1> to vector<8x256xi1>
    %7 = vector.broadcast %cst : f32 to vector<8x256xf32>
    %8 = arith.select %6, %4, %7 : vector<8x256xi1>, vector<8x256xf32>
    %c16_i32 = arith.constant 16 : i32
    %9 = vector.broadcast %c16_i32 : i32 to vector<1x256xi32>
    %10 = arith.cmpi sge, %1, %9 : vector<1x256xi32>
    %c16_i32_2 = arith.constant 16 : i32
    %11 = tpu.dynamic_rotate %0 by %c16_i32_2 dim 1 : vector<8x256xf32>, i32 -> vector<8x256xf32>
    %cst_3 = arith.constant 0xFF800000 : f32
    %12 = vector.shape_cast %10 : vector<1x256xi1> to vector<1x256xi1>
    %13 = vector.broadcast %12 : vector<1x256xi1> to vector<8x256xi1>
    %14 = vector.broadcast %cst_3 : f32 to vector<8x256xf32>
    %15 = arith.select %13, %11, %14 : vector<8x256xi1>, vector<8x256xf32>
    %16 = arith.maximumf %0, %8 : vector<8x256xf32>
    %17 = arith.maximumf %16, %15 : vector<8x256xf32>
    %c16_i32_4 = arith.constant 16 : i32
    %c0_i32 = arith.constant 0 : i32
    %18 = arith.cmpi eq, %c16_i32_4, %c0_i32 : i32
    %c1_i32 = arith.constant 1 : i32
    %19 = arith.select %18, %c1_i32, %c16_i32_4 : i32
    %20 = vector.broadcast %19 : i32 to vector<1x256xi32>
    %21 = arith.remsi %1, %20 : vector<1x256xi32>
    %c0_i32_5 = arith.constant 0 : i32
    %22 = vector.broadcast %c0_i32_5 : i32 to vector<1x256xi32>
    %23 = arith.cmpi ne, %21, %22 : vector<1x256xi32>
    %c0_i32_6 = arith.constant 0 : i32
    %24 = vector.broadcast %c0_i32_6 : i32 to vector<1x256xi32>
    %25 = arith.cmpi slt, %21, %24 : vector<1x256xi32>
    %c0_i32_7 = arith.constant 0 : i32
    %26 = arith.cmpi slt, %19, %c0_i32_7 : i32
    %27 = vector.broadcast %26 : i1 to vector<1x256xi1>
    %28 = vector.broadcast %27 : vector<1x256xi1> to vector<1x256xi1>
    %29 = arith.xori %25, %28 : vector<1x256xi1>
    %30 = arith.andi %29, %23 : vector<1x256xi1>
    %31 = vector.broadcast %19 : i32 to vector<1x256xi32>
    %32 = arith.addi %21, %31 : vector<1x256xi32>
    %33 = arith.select %30, %32, %21 : vector<1x256xi1>, vector<1x256xi32>
    %c15_i32 = arith.constant 15 : i32
    %34 = vector.broadcast %c15_i32 : i32 to vector<1x256xi32>
    %35 = arith.cmpi slt, %33, %34 : vector<1x256xi32>
    %c255_i32 = arith.constant 255 : i32
    %36 = tpu.dynamic_rotate %17 by %c255_i32 dim 1 : vector<8x256xf32>, i32 -> vector<8x256xf32>
    %cst_8 = arith.constant 0xFF800000 : f32
    %37 = vector.shape_cast %35 : vector<1x256xi1> to vector<1x256xi1>
    %38 = vector.broadcast %37 : vector<1x256xi1> to vector<8x256xi1>
    %39 = vector.broadcast %cst_8 : f32 to vector<8x256xf32>
    %40 = arith.select %38, %36, %39 : vector<8x256xi1>, vector<8x256xf32>
    %c0_i32_9 = arith.constant 0 : i32
    %41 = vector.broadcast %c0_i32_9 : i32 to vector<1x256xi32>
    %42 = arith.cmpi sgt, %33, %41 : vector<1x256xi32>
    %c1_i32_10 = arith.constant 1 : i32
    %43 = tpu.dynamic_rotate %17 by %c1_i32_10 dim 1 : vector<8x256xf32>, i32 -> vector<8x256xf32>
    %cst_11 = arith.constant 0xFF800000 : f32
    %44 = vector.shape_cast %42 : vector<1x256xi1> to vector<1x256xi1>
    %45 = vector.broadcast %44 : vector<1x256xi1> to vector<8x256xi1>
    %46 = vector.broadcast %cst_11 : f32 to vector<8x256xf32>
    %47 = arith.select %45, %43, %46 : vector<8x256xi1>, vector<8x256xf32>
    %48 = arith.maximumf %17, %47 : vector<8x256xf32>
    %49 = arith.maximumf %48, %40 : vector<8x256xf32>
    %c0_12 = arith.constant 0 : index
    %c0_13 = arith.constant 0 : index
    %50 = vector.load %arg2[%c0_12, %c0_13] : memref<8x256xf32, #tpu.memory_space<vmem>>, vector<8x256xf32>
    tpu.vector_store %arg2[%c0_12, %c0_13], %49 {strides = array<i32>} : memref<8x256xf32, #tpu.memory_space<vmem>>, vector<8x256xf32>,
    return
  }
  func.func @transform_0(%arg0: i32) -> (i32, i32) {
    %c0_i32 = arith.constant 0 : i32
    %c0_i32_0 = arith.constant 0 : i32
    return %arg0, %c0_i32 : i32, i32
  }
  func.func @transform_1(%arg0: i32) -> (i32, i32) {
    %c0_i32 = arith.constant 0 : i32
    %c0_i32_0 = arith.constant 0 : i32
    return %arg0, %c0_i32 : i32, i32
  }
}

</mosaic_0001>

<llo_original>
// kernel: tpu_custom_call.1
$region0: #{tpu_custom_call.1}
  #allocation0 [shape = 'u32[]', space=smem, size = 0x4, offset = 0x4, fixed_abs, tag = 'smem constant byte address 0x4 - core index']
  #allocation1 [shape = 'u32[72,128]{1,0:T(1,128)}', space=vmem, size = 0x9000, scoped, tag = 'internal scratch']
  %s0 = inlined_call_operand.hbm [shape: f32[8,256], index: 0, kind: input, shape index: {}]
  %s1 = inlined_call_operand.hbm [shape: f32[8,256], index: 1, kind: output, shape index: {}]
  %s2 = sld [smem:[#allocation0]]
  $region18: #{tpu_custom_call.1} parent=0
    _
  %s4 = ssub.s32 1, %s2
  %s5 = scalar_select 0, %s4, %s2
  $region1: #{tpu_custom_call.1} parent=0
    #allocation2 [shape = 'u8[8192]{0}', space=vmem, size = 0x2000, scoped, tag = 'input window, operand 0, single buffered']
    #allocation3 [shape = 's32[1]{0}', space=sflag, size = 0x4, scoped, tag = 'scoped memory for tpu_custom_call.1']
    #allocation4 [shape = 's32[1]{0}', space=sflag, size = 0x4, scoped, tag = 'scoped memory for tpu_custom_call.1']
    #allocation5 [shape = 'u8[8192]{0}', space=vmem, size = 0x2000, scoped, tag = 'output window, operand 0, single buffered']
    %6 = vsyncpa [#allocation3], 0
    %7 = vsyncpa [#allocation4], 0
    // Predicated region
    $region2: #{tpu_custom_call.1} parent=1 // pred_check
      _
    $region3: #{tpu_custom_call.1} parent=1 // pred_check_branch
      %9 = sbr.rel (0) target = $region5
    $region4: #{tpu_custom_call.1} parent=1 // pred_region
      %11 = vsyncadd [#allocation3], 0
      %s13 = sshll.u32 %s0, 4
      %s14 = int_to_ptr.hbm [resolvable:$true] %s13
      %s15 = sshll.u32 [#allocation2], 4
      %s16 = int_to_ptr.vmem [resolvable:$true] %s15
      %18 = dma.hbm_to_vmem [thread:$0]  %s14, 256, %s16, [#allocation3]
    $region5: #{tpu_custom_call.1} parent=1 // pred_fallthru
      _
    // Predicated region
    $region6: #{tpu_custom_call.1} parent=1 // pred_check
      _
    $region7: #{tpu_custom_call.1} parent=1 // pred_check_branch
      %20 = sbr.rel (0) target = $region9
    $region8: #{tpu_custom_call.1} parent=1 // pred_region
      %22 = dma.done [#allocation3], 256
    $region9: #{tpu_custom_call.1} parent=1 // pred_fallthru
      _
    %v23 = vld [vmem:[#allocation2] sm:$0xff]
    %v24 = vld [vmem:[#allocation2 + $0x8] sm:$0xff]
    %v25 = vlaneseq
    %v26 = vand.u32 %v25, 127
    %v27 = vadd.s32 %v26, 128
    %vm28 = vcmp.lt.s32.totalorder %v26, 240
    %vm29 = vcmp.lt.s32.totalorder %v27, 240
    %30 = vrot.lane.b32.xlu0 %v23, 112
    %v31 = vpop.permute.xlu0 %30
    %32 = vrot.lane.b32.xlu0 %v24, 112
    %v33 = vpop.permute.xlu0 %32
    %vm34 = vcmp.lt.s32.totalorder %v26, 112
    %v35 = vsel %vm34, %v31, %v33
    %v36 = vsel %vm34, %v33, %v31
    %v37 = vsel %vm28, 1, 0
    %v38 = vsel %vm29, 1, 0
    %vm39 = vcmp.eq.s32.totalorder %v37, 1
    %vm40 = vcmp.eq.s32.totalorder %v38, 1
    %v41 = vsel %vm39, %v35, -inf
    %v42 = vsel %vm40, %v36, -inf
    %vm43 = vcmp.ge.s32.totalorder %v26, 16
    %vm44 = vcmp.ge.s32.totalorder %v27, 16
    %45 = vrot.lane.b32.xlu0 %v23, 16
    %v46 = vpop.permute.xlu0 %45
    %47 = vrot.lane.b32.xlu0 %v24, 16
    %v48 = vpop.permute.xlu0 %47
    %vm49 = vcmp.lt.s32.totalorder %v26, 16
    %v50 = vsel %vm49, %v46, %v48
    %v51 = vsel %vm49, %v48, %v46
    %v52 = vsel %vm43, 1, 0
    %v53 = vsel %vm44, 1, 0
    %vm54 = vcmp.eq.s32.totalorder %v52, 1
    %vm55 = vcmp.eq.s32.totalorder %v53, 1
    %v56 = vsel %vm54, %v51, -inf
    %v57 = vsel %vm55, %v50, -inf
    %v58 = vmax.f32 %v23, %v41
    %v59 = vmax.f32 %v24, %v42
    %v60 = vmax.f32 %v58, %v56
    %v61 = vmax.f32 %v59, %v57
    %vm62 = vcmp.lt.s32.totalorder %v26, 0
    %v63 = vsub.s32 0, %v26
    %v64 = vsel %vm62, %v63, %v26
    %v65 = vshrl.u32 %v64, 4
    %v66 = vand.u32 %v64, 15
    %v67 = vsub.s32 0, %v66
    %v68 = vsel %vm62, %v67, %v66
    %vm69 = vcmp.lt.s32.totalorder %v27, 0
    %v70 = vsub.s32 0, %v27
    %v71 = vsel %vm69, %v70, %v27
    %v72 = vshrl.u32 %v71, 4
    %v73 = vand.u32 %v71, 15
    %v74 = vsub.s32 0, %v73
    %v75 = vsel %vm69, %v74, %v73
    %vm76 = vcmp.ne.s32.totalorder %v68, 0
    %vm77 = vcmp.ne.s32.totalorder %v75, 0
    %vm78 = vcmp.lt.s32.totalorder %v68, 0
    %vm79 = vcmp.lt.s32.totalorder %v75, 0
    %vm80 = vmand %vm78, %vm76
    %vm81 = vmand %vm79, %vm77
    %v82 = vadd.s32 %v68, 16
    %v83 = vadd.s32 %v75, 16
    %v84 = vsel %vm80, %v82, %v68
    %v85 = vsel %vm81, %v83, %v75
    %vm86 = vcmp.lt.s32.totalorder %v84, 15
    %vm87 = vcmp.lt.s32.totalorder %v85, 15
    %88 = vrot.lane.b32.xlu0 %v60, 127
    %v89 = vpop.permute.xlu0 %88
    %90 = vrot.lane.b32.xlu0 %v61, 127
    %v91 = vpop.permute.xlu0 %90
    %vm92 = vcmp.lt.s32.totalorder %v26, 127
    %v93 = vsel %vm92, %v89, %v91
    %v94 = vsel %vm92, %v91, %v89
    %v95 = vsel %vm86, 1, 0
    %v96 = vsel %vm87, 1, 0
    %vm97 = vcmp.eq.s32.totalorder %v95, 1
    %vm98 = vcmp.eq.s32.totalorder %v96, 1
    %v99 = vsel %vm97, %v93, -inf
    %v100 = vsel %vm98, %v94, -inf
    %vm101 = vcmp.gt.s32.totalorder %v84, 0
    %vm102 = vcmp.gt.s32.totalorder %v85, 0
    %103 = vrot.lane.b32.xlu0 %v60, 1
    %v104 = vpop.permute.xlu0 %103
    %105 = vrot.lane.b32.xlu0 %v61, 1
    %v106 = vpop.permute.xlu0 %105
    %vm107 = vcmp.lt.s32.totalorder %v26, 1
    %v108 = vsel %vm107, %v104, %v106
    %v109 = vsel %vm107, %v106, %v104
    %v110 = vsel %vm101, 1, 0
    %v111 = vsel %vm102, 1, 0
    %vm112 = vcmp.eq.s32.totalorder %v110, 1
    %vm113 = vcmp.eq.s32.totalorder %v111, 1
    %v114 = vsel %vm112, %v109, -inf
    %v115 = vsel %vm113, %v108, -inf
    %v116 = vmax.f32 %v60, %v114
    %v117 = vmax.f32 %v61, %v115
    %v118 = vmax.f32 %v116, %v99
    %v119 = vmax.f32 %v117, %v100
    %120 = vst [vmem:[#allocation5] sm:$0xff] %v118
    %121 = vst [vmem:[#allocation5 + $0x8] sm:$0xff] %v119
    // Predicated region
    $region10: #{tpu_custom_call.1} parent=1 // pred_check
      _
    $region11: #{tpu_custom_call.1} parent=1 // pred_check_branch
      %123 = sbr.rel (0) target = $region13
    $region12: #{tpu_custom_call.1} parent=1 // pred_region
      %125 = vsyncadd [#allocation4], 0
      %s127 = sshll.u32 [#allocation5], 4
      %s128 = int_to_ptr.vmem [resolvable:$true] %s127
      %s129 = sshll.u32 %s1, 4
      %s130 = int_to_ptr.hbm [resolvable:$true] %s129
      %132 = dma.vmem_to_hbm [thread:$0]  %s128, 256, %s130, [#allocation4]
    $region13: #{tpu_custom_call.1} parent=1 // pred_fallthru
      _
    // Predicated region
    $region14: #{tpu_custom_call.1} parent=1 // pred_check
      _
    $region15: #{tpu_custom_call.1} parent=1 // pred_check_branch
      %134 = sbr.rel (0) target = $region17
    $region16: #{tpu_custom_call.1} parent=1 // pred_region
      %136 = dma.done [#allocation4], 256
    $region17: #{tpu_custom_call.1} parent=1 // pred_fallthru
      _
    %137 = vsyncpa [#allocation3], 1
    %138 = vsyncpa [#allocation4], 1

</llo_original>
